<compile_context>
chip_gen: v6e
topology: v6e:2x2x1
jax: 0.10.0
libtpu: 0.0.40
codegen_flags: <defaults>
</compile_context>

<pallas_src>
import jax
import jax.numpy as jnp
from jax.experimental import pallas as pl
from jax.experimental.pallas import tpu as pltpu


def _pad8(c):
    return -(-c // 8) * 8


# ---------------------------------------------------------------------------
# Kernel
# ---------------------------------------------------------------------------
def attention_block_kernel(g_ref, x_ref, wg_ref, wx_ref, tgx_ref,
                           wp_ref, tp_ref, out_ref):
    # Data blocks are (nb, C, t_hw): channels on sublanes, pixels on lanes.
    # Weight casts hoisted out of the per-sample loop (done once per step).
    wg = wg_ref[...].astype(jnp.bfloat16)
    wx = wx_ref[...].astype(jnp.bfloat16)
    tgx = tgx_ref[...]
    wp = wp_ref[...]
    tp = tp_ref[...]

    nb = g_ref.shape[0]
    for b in range(nb):  # static unroll; nb is capped small (<=16)
        x = x_ref[b]                                            # (Fl, t_hw)

        # h = relu( BN(Conv_g(g)) + BN(Conv_x(x)) ); BN pre-folded into wg/wx,
        # both shifts pre-summed into tgx.  bf16 operands, f32 accumulation.
        h = (jnp.dot(wg, g_ref[b].astype(jnp.bfloat16),
                     preferred_element_type=jnp.float32)
             + jnp.dot(wx, x.astype(jnp.bfloat16),
                       preferred_element_type=jnp.float32)
             + tgx)                                             # (Fint, t_hw)
        h = jnp.maximum(h, 0.0)

        # psi = sigmoid( BN(Conv_psi(h)) ): Fint->1 projection as a VPU
        # broadcast-multiply + sublane reduce (stays lane-dense).
        p = jnp.sum(h * wp, axis=0, keepdims=True) + tp         # (1, t_hw)
        # Exact, numerically stable sigmoid via tanh (EUP slot).
        p = 0.5 * (jnp.tanh(0.5 * p) + 1.0)

        # out = x * psi (broadcast over channels) -- lane-dense store.
        out_ref[b] = (x.astype(jnp.float32) * p).astype(out_ref.dtype)


# ---------------------------------------------------------------------------
# Wrapper
# ---------------------------------------------------------------------------
def attention_block(g_nchw, x_nchw, params, *,
                    t_hw_max=65536,
                    vmem_budget_bytes=12 << 20,
                    max_samples_per_block=16):
    """g: (N, F_g, H, W), x: (N, F_l, H, W) with identical spatial size.
    Returns (N, F_l, H, W)."""
    N, Fg, H, W = g_nchw.shape
    Nx, Fl, Hx, Wx = x_nchw.shape
    assert (N, H, W) == (Nx, Hx, Wx), "F.interpolate path not implemented"
    Fint = params["wg"].shape[0]
    HW = H * W

    itemsize = jnp.dtype(x_nchw.dtype).itemsize
    # Double-buffered, sublane-padded bytes moved per pixel per sample
    # (g in + x in + out).
    db_bytes_per_pixel = (_pad8(Fg) + 2 * _pad8(Fl)) * itemsize * 2

    # ---- tiling -----------------------------------------------------------
    # Largest lane tile that fits the VMEM budget (and the 64K cap).
    t_cap = max(128,
                (min(t_hw_max, vmem_budget_bytes // db_bytes_per_pixel)
                 // 128) * 128)

    if HW > t_cap:
        # Big image: one sample per step, large lane-aligned pixel tile;
        # Pallas masks the tail block (compute is per-pixel along lanes, so
        # padded lanes never pollute valid output lanes).
        nb, t_hw = 1, t_cap
    else:
        # Small image: take the full image per step and fold several batch
        # samples into one block to amortize the ~0.35us per-step overhead.
        t_hw = HW
        per_sample = max(1, HW * db_bytes_per_pixel)
        nb = max(1, min(N, max_samples_per_block,
                        vmem_budget_bytes // per_sample))
        if N >= 2:
            nb = max(1, min(nb, N // 2))   # keep >=2 grid steps (v7x: 2 TCs)
        elif HW >= 1024:
            # N == 1 and whole image fits one block: split pixels across two
            # steps so both v7x TensorCores stream HBM.
            t_hw = max(128, ((HW // 2) // 128) * 128)

    grid = (pl.cdiv(N, nb), pl.cdiv(HW, t_hw))

    # Free (metadata-only) views of the NCHW arrays: (N, C, H*W).
    g3 = g_nchw.reshape(N, Fg, HW)
    x3 = x_nchw.reshape(N, Fl, HW)

    def data_spec(c):
        return pl.BlockSpec((nb, c, t_hw), lambda n, i: (n, 0, i))

    def rep(shape):  # small parameter, replicated across the grid
        return pl.BlockSpec(shape, lambda n, i: (0, 0))

    out3 = pl.pallas_call(
        attention_block_kernel,
        out_shape=jax.ShapeDtypeStruct((N, Fl, HW), x_nchw.dtype),
        grid_spec=pltpu.PrefetchScalarGridSpec(
            num_scalar_prefetch=0,
            grid=grid,
            in_specs=[
                data_spec(Fg),            # g block   (nb, Fg, t_hw)
                data_spec(Fl),            # x block   (nb, Fl, t_hw)
                rep((Fint, Fg)),          # wg  (scale-folded, transposed conv)
                rep((Fint, Fl)),          # wx
                rep((Fint, 1)),           # combined shift of both branches
                rep((Fint, 1)),           # psi weight column (scale-folded)
                rep((1, 1)),              # psi shift
            ],
            out_specs=pl.BlockSpec((nb, Fl, t_hw), lambda n, i: (n, 0, i)),
        ),
        compiler_params=pltpu.CompilerParams(
            dimension_semantics=("parallel", "parallel"),
            vmem_limit_bytes=32 << 20),   # v5e scoped default is only 16 MiB
    )(g3, x3, params["wg"], params["wx"], params["tgx"],
      params["wp"], params["tp"])

    return out3.reshape(N, Fl, H, W)


# ---------------------------------------------------------------------------
# Parameters (synthetic, deterministic) + host-side folding
# ---------------------------------------------------------------------------
def make_raw_params(key, F_g, F_l, F_int):
    """Raw PyTorch-style params: 1x1 conv weight (Cout, Cin), bias, BN stats."""
    def branch(k, cin, cout):
        ks = jax.random.split(k, 6)
        return dict(
            w=jax.random.normal(ks[0], (cout, cin), jnp.float32) * 0.1,
            b=jax.random.normal(ks[1], (cout,), jnp.float32) * 0.1,
            gamma=1.0 + 0.1 * jax.random.normal(ks[2], (cout,), jnp.float32),
            beta=0.1 * jax.random.normal(ks[3], (cout,), jnp.float32),
            mean=0.1 * jax.random.normal(ks[4], (cout,), jnp.float32),
            var=jnp.abs(jax.random.normal(ks[5], (cout,), jnp.float32)) + 0.5,
        )
    kg, kx, kp = jax.random.split(key, 3)
    return dict(g=branch(kg, F_g, F_int),
                x=branch(kx, F_l, F_int),
                p=branch(kp, F_int, 1))


def fold_params(raw, eps=1e-5):
    """Fold eval-mode BN into the conv weights/shifts for the kernel."""
    def fold(br):
        scale = br["gamma"] / jnp.sqrt(br["var"] + eps)        # (Cout,)
        w = br["w"] * scale[:, None]                           # (Cout, Cin)
        shift = br["beta"] + scale * (br["b"] - br["mean"])    # (Cout,)
        return w, shift

    wg, tg = fold(raw["g"])          # (Fint, Fg), (Fint,)
    wx, tx = fold(raw["x"])          # (Fint, Fl), (Fint,)
    wp, tp = fold(raw["p"])          # (1, Fint),  (1,)
    Fint = wg.shape[0]
    return dict(
        wg=wg,                                  # (Fint, Fg)
        wx=wx,                                  # (Fint, Fl)
        tgx=(tg + tx).reshape(Fint, 1),         # combined branch shift
        wp=wp.reshape(Fint, 1),                 # psi weight as a column
        tp=tp.reshape(1, 1),                    # psi shift
    )


# ---------------------------------------------------------------------------
# Pure-JAX reference (mirrors the PyTorch forward, eval-mode BN)
# ---------------------------------------------------------------------------
def reference_attention_block(g, x, raw, eps=1e-5):
    def conv_bn(inp, br):
        y = jnp.einsum("nchw,oc->nohw", inp, br["w"]) + br["b"][None, :, None, None]
        scale = br["gamma"] / jnp.sqrt(br["var"] + eps)
        return ((y - br["mean"][None, :, None, None]) * scale[None, :, None, None]
                + br["beta"][None, :, None, None])

    g1 = conv_bn(g, raw["g"])
    x1 = conv_bn(x, raw["x"])
    h = jnp.maximum(g1 + x1, 0.0)
    psi = jax.nn.sigmoid(conv_bn(h, raw["p"]))
    return x * psi


# ---------------------------------------------------------------------------
if __name__ == "__main__":
    key = jax.random.PRNGKey(0)

    def run_case(N, F_g, F_l, F_int, H, W, tag):
        k = jax.random.fold_in(key, tag)
        kg, kx, kp = jax.random.split(k, 3)
        g = jax.random.normal(kg, (N, F_g, H, W), jnp.float32)
        x = jax.random.normal(kx, (N, F_l, H, W), jnp.float32)
        raw = make_raw_params(kp, F_g, F_l, F_int)
        params = fold_params(raw)

        out = attention_block(g, x, params)
        jax.block_until_ready(out)
        assert out.shape == (N, F_l, H, W)

        ref = reference_attention_block(g, x, raw)
        assert jnp.allclose(out, ref, rtol=2e-2, atol=2e-2), \
            f"mismatch vs reference (N={N}, H={H}, W={W})"
        return out

    # Main demo shape (matches the module spec sizes); grid = (2, 1).
    run_case(2, 4, 4, 8, 16, 16, 0)
    # Batched-samples-per-block path (nb = 2); grid = (2, 1).
    run_case(4, 4, 4, 8, 32, 32, 1)
    # Single-sample pixel-split path (two grid steps across the image).
    run_case(1, 4, 4, 8, 64, 64, 2)

    print("KERNEL_OK")
</pallas_src>

<mosaic_0001>
module attributes {stable_mosaic.version = 11 : i64} {
  func.func @attention_block_kernel(%arg0: i32, %arg1: i32, %arg2: memref<1x4x256xf32, #tpu.memory_space<vmem>>, %arg3: memref<1x4x256xf32, #tpu.memory_space<vmem>>, %arg4: memref<8x4xf32, #tpu.memory_space<vmem>>, %arg5: memref<8x4xf32, #tpu.memory_space<vmem>>, %arg6: memref<8x1xf32, #tpu.memory_space<vmem>>, %arg7: memref<8x1xf32, #tpu.memory_space<vmem>>, %arg8: memref<1x1xf32, #tpu.memory_space<vmem>>, %arg9: memref<1x4x256xf32, #tpu.memory_space<vmem>>) attributes {dimension_semantics = [#tpu.dimension_semantics<parallel>, #tpu.dimension_semantics<parallel>], iteration_bounds = array<i64: 2, 1>, scalar_prefetch = 0 : i64, scratch_operands = 0 : i64, tpu.core_type = #tpu.core_type<tc>, window_params = [{transform_indices = @transform_0, window_bounds = array<i64: 1, 4, 256>}, {transform_indices = @transform_1, window_bounds = array<i64: 1, 4, 256>}, {pipeline_mode = #tpu.pipeline_mode<synchronous>, transform_indices = @transform_2, window_bounds = array<i64: 8, 4>}, {pipeline_mode = #tpu.pipeline_mode<synchronous>, transform_indices = @transform_3, window_bounds = array<i64: 8, 4>}, {pipeline_mode = #tpu.pipeline_mode<synchronous>, transform_indices = @transform_4, window_bounds = array<i64: 8, 1>}, {pipeline_mode = #tpu.pipeline_mode<synchronous>, transform_indices = @transform_5, window_bounds = array<i64: 8, 1>}, {pipeline_mode = #tpu.pipeline_mode<synchronous>, transform_indices = @transform_6, window_bounds = array<i64: 1, 1>}, {transform_indices = @transform_7, window_bounds = array<i64: 1, 4, 256>}]} {
    %c0 = arith.constant 0 : index
    %c0_0 = arith.constant 0 : index
    %0 = vector.load %arg4[%c0, %c0_0] : memref<8x4xf32, #tpu.memory_space<vmem>>, vector<8x4xf32>
    %1 = arith.truncf %0 : vector<8x4xf32> to vector<8x4xbf16>
    %c0_1 = arith.constant 0 : index
    %c0_2 = arith.constant 0 : index
    %2 = vector.load %arg5[%c0_1, %c0_2] : memref<8x4xf32, #tpu.memory_space<vmem>>, vector<8x4xf32>
    %3 = arith.truncf %2 : vector<8x4xf32> to vector<8x4xbf16>
    %c0_3 = arith.constant 0 : index
    %c0_4 = arith.constant 0 : index
    %4 = vector.load %arg6[%c0_3, %c0_4] : memref<8x1xf32, #tpu.memory_space<vmem>>, vector<8x1xf32>
    %c0_5 = arith.constant 0 : index
    %c0_6 = arith.constant 0 : index
    %5 = vector.load %arg7[%c0_5, %c0_6] : memref<8x1xf32, #tpu.memory_space<vmem>>, vector<8x1xf32>
    %c0_7 = arith.constant 0 : index
    %c0_8 = arith.constant 0 : index
    %6 = vector.load %arg8[%c0_7, %c0_8] : memref<1x1xf32, #tpu.memory_space<vmem>>, vector<1x1xf32>
    %c0_9 = arith.constant 0 : index
    %c0_10 = arith.constant 0 : index
    %c0_11 = arith.constant 0 : index
    %7 = vector.load %arg3[%c0_9, %c0_10, %c0_11] : memref<1x4x256xf32, #tpu.memory_space<vmem>>, vector<1x4x256xf32>
    %8 = vector.shape_cast %7 : vector<1x4x256xf32> to vector<4x256xf32>
    %c0_12 = arith.constant 0 : index
    %c0_13 = arith.constant 0 : index
    %c0_14 = arith.constant 0 : index
    %9 = vector.load %arg2[%c0_12, %c0_13, %c0_14] : memref<1x4x256xf32, #tpu.memory_space<vmem>>, vector<1x4x256xf32>
    %10 = vector.shape_cast %9 : vector<1x4x256xf32> to vector<4x256xf32>
    %11 = arith.truncf %10 : vector<4x256xf32> to vector<4x256xbf16>
    %cst = arith.constant dense<0.000000e+00> : vector<8x256xf32>
    %12 = tpu.matmul %1, %11, %cst {dimension_numbers = #tpu.dot_dimension_numbers<[1], [0], [0], [1], [0, 0, 1, 1], [], []>} : vector<8x4xbf16>, vector<4x256xbf16>, vector<8x256xf32> -> vector<8x256xf32>
    %13 = arith.truncf %8 : vector<4x256xf32> to vector<4x256xbf16>
    %cst_15 = arith.constant dense<0.000000e+00> : vector<8x256xf32>
    %14 = tpu.matmul %3, %13, %cst_15 {dimension_numbers = #tpu.dot_dimension_numbers<[1], [0], [0], [1], [0, 0, 1, 1], [], []>} : vector<8x4xbf16>, vector<4x256xbf16>, vector<8x256xf32> -> vector<8x256xf32>
    %15 = arith.addf %12, %14 : vector<8x256xf32>
    %16 = vector.broadcast %4 : vector<8x1xf32> to vector<8x256xf32>
    %17 = arith.addf %15, %16 : vector<8x256xf32>
    %cst_16 = arith.constant 0.000000e+00 : f32
    %18 = vector.broadcast %cst_16 : f32 to vector<8x256xf32>
    %19 = arith.maximumf %17, %18 : vector<8x256xf32>
    %20 = vector.broadcast %5 : vector<8x1xf32> to vector<8x256xf32>
    %21 = arith.mulf %19, %20 : vector<8x256xf32>
    %cst_17 = arith.constant dense<0.000000e+00> : vector<256xf32>
    %22 = vector.multi_reduction <add>, %21, %cst_17 [0] : vector<8x256xf32> to vector<256xf32>
    %23 = vector.shape_cast %22 : vector<256xf32> to vector<1x256xf32>
    %24 = vector.broadcast %6 : vector<1x1xf32> to vector<1x256xf32>
    %25 = arith.addf %23, %24 : vector<1x256xf32>
    %cst_18 = arith.constant 5.000000e-01 : f32
    %26 = vector.broadcast %cst_18 : f32 to vector<1x256xf32>
    %27 = arith.mulf %26, %25 : vector<1x256xf32>
    %28 = math.tanh %27 : vector<1x256xf32>
    %cst_19 = arith.constant 1.000000e+00 : f32
    %29 = vector.broadcast %cst_19 : f32 to vector<1x256xf32>
    %30 = arith.addf %28, %29 : vector<1x256xf32>
    %cst_20 = arith.constant 5.000000e-01 : f32
    %31 = vector.broadcast %cst_20 : f32 to vector<1x256xf32>
    %32 = arith.mulf %31, %30 : vector<1x256xf32>
    %33 = vector.broadcast %32 : vector<1x256xf32> to vector<4x256xf32>
    %34 = arith.mulf %8, %33 : vector<4x256xf32>
    %c0_21 = arith.constant 0 : index
    %c0_22 = arith.constant 0 : index
    %c0_23 = arith.constant 0 : index
    %35 = vector.load %arg9[%c0_21, %c0_22, %c0_23] : memref<1x4x256xf32, #tpu.memory_space<vmem>>, vector<1x4x256xf32>
    %36 = vector.shape_cast %35 : vector<1x4x256xf32> to vector<4x256xf32>
    %37 = vector.shape_cast %34 : vector<4x256xf32> to vector<1x4x256xf32>
    tpu.vector_store %arg9[%c0_21, %c0_22, %c0_23], %37 {strides = array<i32>} : memref<1x4x256xf32, #tpu.memory_space<vmem>>, vector<1x4x256xf32>,
    return
  }
  func.func @transform_0(%arg0: i32, %arg1: i32) -> (i32, i32, i32) {
    %c0_i32 = arith.constant 0 : i32
    %c0_i32_0 = arith.constant 0 : i32
    return %arg0, %c0_i32, %arg1 : i32, i32, i32
  }
  func.func @transform_1(%arg0: i32, %arg1: i32) -> (i32, i32, i32) {
    %c0_i32 = arith.constant 0 : i32
    %c0_i32_0 = arith.constant 0 : i32
    return %arg0, %c0_i32, %arg1 : i32, i32, i32
  }
  func.func @transform_2(%arg0: i32, %arg1: i32) -> (i32, i32) {
    %c0_i32 = arith.constant 0 : i32
    %c0_i32_0 = arith.constant 0 : i32
    %c0_i32_1 = arith.constant 0 : i32
    return %c0_i32, %c0_i32_0 : i32, i32
  }
  func.func @transform_3(%arg0: i32, %arg1: i32) -> (i32, i32) {
    %c0_i32 = arith.constant 0 : i32
    %c0_i32_0 = arith.constant 0 : i32
    %c0_i32_1 = arith.constant 0 : i32
    return %c0_i32, %c0_i32_0 : i32, i32
  }
  func.func @transform_4(%arg0: i32, %arg1: i32) -> (i32, i32) {
    %c0_i32 = arith.constant 0 : i32
    %c0_i32_0 = arith.constant 0 : i32
    %c0_i32_1 = arith.constant 0 : i32
    return %c0_i32, %c0_i32_0 : i32, i32
  }
  func.func @transform_5(%arg0: i32, %arg1: i32) -> (i32, i32) {
    %c0_i32 = arith.constant 0 : i32
    %c0_i32_0 = arith.constant 0 : i32
    %c0_i32_1 = arith.constant 0 : i32
    return %c0_i32, %c0_i32_0 : i32, i32
  }
  func.func @transform_6(%arg0: i32, %arg1: i32) -> (i32, i32) {
    %c0_i32 = arith.constant 0 : i32
    %c0_i32_0 = arith.constant 0 : i32
    %c0_i32_1 = arith.constant 0 : i32
    return %c0_i32, %c0_i32_0 : i32, i32
  }
  func.func @transform_7(%arg0: i32, %arg1: i32) -> (i32, i32, i32) {
    %c0_i32 = arith.constant 0 : i32
    %c0_i32_0 = arith.constant 0 : i32
    return %arg0, %c0_i32, %arg1 : i32, i32, i32
  }
}

</mosaic_0001>

<llo_original>
// kernel: tpu_custom_call.1
$region0: #{tpu_custom_call.1}
  #allocation0 [shape = 'u32[]', space=smem, size = 0x4, offset = 0x4, fixed_abs, tag = 'smem constant byte address 0x4 - core index']
  #allocation1 [shape = 'u32[144,128]{1,0:T(1,128)}', space=vmem, size = 0x12000, scoped, tag = 'internal scratch']
  #allocation2 [shape = 'f32[1,1]{1,0:T(1,128)S(1)}', space=vmem, size = 0x200, scoped, tag = 'scoped memory for tpu_custom_call.1']
  %s0 = inlined_call_operand.vmem [shape: f32[2,4,256], index: 0, kind: input, shape index: {}]
  %s1 = inlined_call_operand.vmem [shape: f32[2,4,256], index: 1, kind: input, shape index: {}]
  %s2 = inlined_call_operand.vmem [shape: f32[8,4], index: 2, kind: input, shape index: {}]
  %s3 = inlined_call_operand.vmem [shape: f32[8,4], index: 3, kind: input, shape index: {}]
  %s4 = inlined_call_operand.vmem [shape: f32[8,1], index: 4, kind: input, shape index: {}]
  %s5 = inlined_call_operand.vmem [shape: f32[8,1], index: 5, kind: input, shape index: {}]
  %s6 = inlined_call_operand.<no memory space> [shape: f32[1,1], index: 6, kind: input, shape index: {}]
  %s7 = inlined_call_operand.hbm [shape: f32[2,4,256], index: 7, kind: output, shape index: {}]
  %s8 = sld [smem:[#allocation0]]
  $region61: #{tpu_custom_call.1} parent=0
    _
  %s10 = ssub.s32 1, %s8
  %s11 = scalar_select 0, %s10, %s8
  %v12 = vstv %s6
  %13 = vst [vmem:[#allocation2] sm:$0x1] %v12
  $region1: #{tpu_custom_call.1} parent=0
    #allocation3 [shape = 'u8[8192]{0}', space=vmem, size = 0x2000, scoped, tag = 'output window, operand 0']
    #allocation4 [shape = 's32[2]{0}', space=sflag, size = 0x8, scoped, tag = 'scoped memory for tpu_custom_call.1']
    %14 = vsyncpa [#allocation4], 0
    %s15 = scalar_lea.sflag [#allocation4], 1
    %16 = vsyncpa %s15, 0
    loop: start=0, step=1, limit=4
    $region2: #{tpu_custom_call.1} parent=1 // loop_pre_header
      _
    $region3: #{tpu_custom_call.1} parent=1 // loop_header
      %s18 = sphi 0, %s22
      %p19 = scmp.ge.s32.totalorder %s18, 4
      %s25 = sphi 0, %s37
      %s26 = sphi 0, %s33
      %s27 = sphi 0, %s25
      %s28 = sphi 0, %s26
      %s29 = sphi 0, %s27
      %s30 = sphi 0, %s28
      %s42 = sphi 0, %s44
      %s45 = sphi 0, %s42
      %s46 = sphi 0, %s45
      %s62 = sphi 0, %s46
      %s70 = sphi 0, %s72
      %s73 = sphi 0, %s70
      %s74 = sphi 0, %s73
      %s90 = sphi 0, %s74
      %s94 = sphi 0, %s94
      %s96 = sphi 0, %s94
      %s97 = sphi 0, %s96
      %s111 = sphi 0, %s97
      %s115 = sphi 0, %s115
      %s117 = sphi 0, %s115
      %s118 = sphi 0, %s117
      %s132 = sphi 0, %s118
      %s136 = sphi 0, %s136
      %s138 = sphi 0, %s136
      %s139 = sphi 0, %s138
      %s153 = sphi 0, %s139
      %s157 = sphi 0, %s157
      %s159 = sphi 0, %s157
      %s160 = sphi 0, %s159
      %s174 = sphi 0, %s160
      %s178 = sphi 0, %s178
      %s180 = sphi 0, %s178
      %s181 = sphi 0, %s180
      %s195 = sphi 0, %s181
      %s203 = sphi 0, %s205
      %s206 = sphi 0, %s203
      %s207 = sphi 0, %s206
      %s223 = sphi 0, %s207
    $region4: #{tpu_custom_call.1} parent=1 // loop_header_branch
      %21 = sbr.rel (%p19) target = $region8
    $region5: #{tpu_custom_call.1} parent=1 // loop_body
      %s23 = ssub.s32 %s18, 1
      %s24 = ssub.s32 %s18, 2
      %s31 = sadd.s32 1, %s26
      %p32 = scmp.ge.s32.totalorder %s31, 1
      %s33 = scalar_select %p32, 0, %s31
      %s34 = sadd.s32 1, %s25
      %s35 = scalar_select %p32, %s34, %s25
      %p36 = scmp.ge.s32.totalorder %s35, 2
      %s37 = scalar_select %p36, 0, %s35
      %s38 = ssub.s32 %s25, %s37
      %s39 = ssub.s32 %s26, %s33
      %s40 = sor.u32 %s38, %s39
      %p41 = scmp.eq.s32.totalorder %s40, 0
      %s43 = sadd.s32 %s42, 1
      %s44 = scalar_select %p41, %s42, %s43
      %p47 = pneg %p41
      %p48 = scmp.eq.s32.totalorder %s18, 1
      %p49 = por %p47, %p48
      %p50 = scmp.ne.s32.totalorder %s42, %s45
      %p51 = scmp.eq.s32.totalorder %s18, 0
      %p52 = por %p50, %p51
      %p53 = scmp.ne.s32.totalorder %s42, %s45
      %p54 = scmp.eq.s32.totalorder %s23, 1
      %p55 = por %p53, %p54
      %p56 = scmp.ne.s32.totalorder %s45, %s46
      %p57 = scmp.eq.s32.totalorder %s23, 0
      %p58 = por %p56, %p57
      %p59 = scmp.ne.s32.totalorder %s45, %s46
      %p60 = scmp.eq.s32.totalorder %s24, 1
      %p61 = por %p59, %p60
      %p63 = scmp.ne.s32.totalorder %s46, %s62
      %p64 = scmp.eq.s32.totalorder %s24, 0
      %p65 = por %p63, %p64
      %s66 = ssub.s32 %s25, %s37
      %s67 = ssub.s32 %s26, %s33
      %s68 = sor.u32 %s66, %s67
      %p69 = scmp.eq.s32.totalorder %s68, 0
      %s71 = sadd.s32 %s70, 1
      %s72 = scalar_select %p69, %s70, %s71
      %p75 = pneg %p69
      %p76 = scmp.eq.s32.totalorder %s18, 1
      %p77 = por %p75, %p76
      %p78 = scmp.ne.s32.totalorder %s70, %s73
      %p79 = scmp.eq.s32.totalorder %s18, 0
      %p80 = por %p78, %p79
      %p81 = scmp.ne.s32.totalorder %s70, %s73
      %p82 = scmp.eq.s32.totalorder %s23, 1
      %p83 = por %p81, %p82
      %p84 = scmp.ne.s32.totalorder %s73, %s74
      %p85 = scmp.eq.s32.totalorder %s23, 0
      %p86 = por %p84, %p85
      %p87 = scmp.ne.s32.totalorder %s73, %s74
      %p88 = scmp.eq.s32.totalorder %s24, 1
      %p89 = por %p87, %p88
      %p91 = scmp.ne.s32.totalorder %s74, %s90
      %p92 = scmp.eq.s32.totalorder %s24, 0
      %p93 = por %p91, %p92
      %s95 = sadd.s32 %s94, 1
      %p98 = scmp.eq.s32.totalorder %s18, 1
      %p99 = scmp.ne.s32.totalorder %s94, %s96
      %p100 = scmp.eq.s32.totalorder %s18, 0
      %p101 = por %p99, %p100
      %p102 = scmp.ne.s32.totalorder %s94, %s96
      %p103 = scmp.eq.s32.totalorder %s23, 1
      %p104 = por %p102, %p103
      %p105 = scmp.ne.s32.totalorder %s96, %s97
      %p106 = scmp.eq.s32.totalorder %s23, 0
      %p107 = por %p105, %p106
      %p108 = scmp.ne.s32.totalorder %s96, %s97
      %p109 = scmp.eq.s32.totalorder %s24, 1
      %p110 = por %p108, %p109
      %p112 = scmp.ne.s32.totalorder %s97, %s111
      %p113 = scmp.eq.s32.totalorder %s24, 0
      %p114 = por %p112, %p113
      %s116 = sadd.s32 %s115, 1
      %p119 = scmp.eq.s32.totalorder %s18, 1
      %p120 = scmp.ne.s32.totalorder %s115, %s117
      %p121 = scmp.eq.s32.totalorder %s18, 0
      %p122 = por %p120, %p121
      %p123 = scmp.ne.s32.totalorder %s115, %s117
      %p124 = scmp.eq.s32.totalorder %s23, 1
      %p125 = por %p123, %p124
      %p126 = scmp.ne.s32.totalorder %s117, %s118
      %p127 = scmp.eq.s32.totalorder %s23, 0
      %p128 = por %p126, %p127
      %p129 = scmp.ne.s32.totalorder %s117, %s118
      %p130 = scmp.eq.s32.totalorder %s24, 1
      %p131 = por %p129, %p130
      %p133 = scmp.ne.s32.totalorder %s118, %s132
      %p134 = scmp.eq.s32.totalorder %s24, 0
      %p135 = por %p133, %p134
      %s137 = sadd.s32 %s136, 1
      %p140 = scmp.eq.s32.totalorder %s18, 1
      %p141 = scmp.ne.s32.totalorder %s136, %s138
      %p142 = scmp.eq.s32.totalorder %s18, 0
      %p143 = por %p141, %p142
      %p144 = scmp.ne.s32.totalorder %s136, %s138
      %p145 = scmp.eq.s32.totalorder %s23, 1
      %p146 = por %p144, %p145
      %p147 = scmp.ne.s32.totalorder %s138, %s139
      %p148 = scmp.eq.s32.totalorder %s23, 0
      %p149 = por %p147, %p148
      %p150 = scmp.ne.s32.totalorder %s138, %s139
      %p151 = scmp.eq.s32.totalorder %s24, 1
      %p152 = por %p150, %p151
      %p154 = scmp.ne.s32.totalorder %s139, %s153
      %p155 = scmp.eq.s32.totalorder %s24, 0
      %p156 = por %p154, %p155
      %s158 = sadd.s32 %s157, 1
      %p161 = scmp.eq.s32.totalorder %s18, 1
      %p162 = scmp.ne.s32.totalorder %s157, %s159
      %p163 = scmp.eq.s32.totalorder %s18, 0
      %p164 = por %p162, %p163
      %p165 = scmp.ne.s32.totalorder %s157, %s159
      %p166 = scmp.eq.s32.totalorder %s23, 1
      %p167 = por %p165, %p166
      %p168 = scmp.ne.s32.totalorder %s159, %s160
      %p169 = scmp.eq.s32.totalorder %s23, 0
      %p170 = por %p168, %p169
      %p171 = scmp.ne.s32.totalorder %s159, %s160
      %p172 = scmp.eq.s32.totalorder %s24, 1
      %p173 = por %p171, %p172
      %p175 = scmp.ne.s32.totalorder %s160, %s174
      %p176 = scmp.eq.s32.totalorder %s24, 0
      %p177 = por %p175, %p176
      %s179 = sadd.s32 %s178, 1
      %p182 = scmp.eq.s32.totalorder %s18, 1
      %p183 = scmp.ne.s32.totalorder %s178, %s180
      %p184 = scmp.eq.s32.totalorder %s18, 0
      %p185 = por %p183, %p184
      %p186 = scmp.ne.s32.totalorder %s178, %s180
      %p187 = scmp.eq.s32.totalorder %s23, 1
      %p188 = por %p186, %p187
      %p189 = scmp.ne.s32.totalorder %s180, %s181
      %p190 = scmp.eq.s32.totalorder %s23, 0
      %p191 = por %p189, %p190
      %p192 = scmp.ne.s32.totalorder %s180, %s181
      %p193 = scmp.eq.s32.totalorder %s24, 1
      %p194 = por %p192, %p193
      %p196 = scmp.ne.s32.totalorder %s181, %s195
      %p197 = scmp.eq.s32.totalorder %s24, 0
      %p198 = por %p196, %p197
      %s199 = ssub.s32 %s25, %s37
      %s200 = ssub.s32 %s26, %s33
      %s201 = sor.u32 %s199, %s200
      %p202 = scmp.eq.s32.totalorder %s201, 0
      %s204 = sadd.s32 %s203, 1
      %s205 = scalar_select %p202, %s203, %s204
      %p208 = pneg %p202
      %p209 = scmp.eq.s32.totalorder %s18, 1
      %p210 = por %p208, %p209
      %p211 = scmp.ne.s32.totalorder %s203, %s206
      %p212 = scmp.eq.s32.totalorder %s18, 0
      %p213 = por %p211, %p212
      %p214 = scmp.ne.s32.totalorder %s203, %s206
      %p215 = scmp.eq.s32.totalorder %s23, 1
      %p216 = por %p214, %p215
      %p217 = scmp.ne.s32.totalorder %s206, %s207
      %p218 = scmp.eq.s32.totalorder %s23, 0
      %p219 = por %p217, %p218
      %p220 = scmp.ne.s32.totalorder %s206, %s207
      %p221 = scmp.eq.s32.totalorder %s24, 1
      %p222 = por %p220, %p221
      %p224 = scmp.ne.s32.totalorder %s207, %s223
      %p225 = scmp.eq.s32.totalorder %s24, 0
      %p226 = por %p224, %p225
      %p227 = scmp.le.s32.totalorder 1, %s18
      %p228 = scmp.lt.s32.totalorder %s18, 3
      %p229 = pnand %p227, %p228
      %p230 = pneg %p229
      // Predicated region
      $region9: #{tpu_custom_call.1} parent=5 // pred_check
        _
      $region10: #{tpu_custom_call.1} parent=5 // pred_check_branch
        %232 = sbr.rel (%p229) target = $region12
      $region11: #{tpu_custom_call.1} parent=5 // pred_region
        %s233 = ssub.s32 %s18, 1
        // Predicated region
        $region13: #{tpu_custom_call.1} parent=11 // pred_check
          %p234 = pneg %p107
        $region14: #{tpu_custom_call.1} parent=11 // pred_check_branch
          %236 = sbr.rel (%p234) target = $region16
        $region15: #{tpu_custom_call.1} parent=11 // pred_region
          _
        $region16: #{tpu_custom_call.1} parent=11 // pred_fallthru
          _
        // Predicated region
        $region17: #{tpu_custom_call.1} parent=11 // pred_check
          %p237 = pneg %p128
        $region18: #{tpu_custom_call.1} parent=11 // pred_check_branch
          %239 = sbr.rel (%p237) target = $region20
        $region19: #{tpu_custom_call.1} parent=11 // pred_region
          _
        $region20: #{tpu_custom_call.1} parent=11 // pred_fallthru
          _
        // Predicated region
        $region21: #{tpu_custom_call.1} parent=11 // pred_check
          %p240 = pneg %p149
        $region22: #{tpu_custom_call.1} parent=11 // pred_check_branch
          %242 = sbr.rel (%p240) target = $region24
        $region23: #{tpu_custom_call.1} parent=11 // pred_region
          _
        $region24: #{tpu_custom_call.1} parent=11 // pred_fallthru
          _
        // Predicated region
        $region25: #{tpu_custom_call.1} parent=11 // pred_check
          %p243 = pneg %p170
        $region26: #{tpu_custom_call.1} parent=11 // pred_check_branch
          %245 = sbr.rel (%p243) target = $region28
        $region27: #{tpu_custom_call.1} parent=11 // pred_region
          _
        $region28: #{tpu_custom_call.1} parent=11 // pred_fallthru
          _
        // Predicated region
        $region29: #{tpu_custom_call.1} parent=11 // pred_check
          %p246 = pneg %p191
        $region30: #{tpu_custom_call.1} parent=11 // pred_check_branch
          %248 = sbr.rel (%p246) target = $region32
        $region31: #{tpu_custom_call.1} parent=11 // pred_region
          _
        $region32: #{tpu_custom_call.1} parent=11 // pred_fallthru
          _
      $region12: #{tpu_custom_call.1} parent=5 // pred_fallthru
        _
      %p249 = scmp.lt.s32.totalorder %s18, 2
      // Predicated region
      $region33: #{tpu_custom_call.1} parent=5 // pred_check
        %p250 = pneg %p249
      $region34: #{tpu_custom_call.1} parent=5 // pred_check_branch
        %252 = sbr.rel (%p250) target = $region36
      $region35: #{tpu_custom_call.1} parent=5 // pred_region
        // Predicated region
        $region37: #{tpu_custom_call.1} parent=35 // pred_check
          %p253 = pneg %p52
        $region38: #{tpu_custom_call.1} parent=35 // pred_check_branch
          %255 = sbr.rel (%p253) target = $region40
        $region39: #{tpu_custom_call.1} parent=35 // pred_region
          %s256 = smul.u32 2, %s26
          %p257 = scmp.lt.s32.totalorder %s25, 1
          %s258 = scalar_select %p257, %s25, 1
          %p259 = scmp.lt.s32.totalorder %s256, 1
          %s260 = scalar_select %p259, %s256, 1
          %s261 = smul.addr %s258, 2
          %s262 = sadd.s32 %s260, %s261
          %s263 = smul.addr %s262, 4
          %s264 = scalar_lea.vmem %s0, %s263
          %s265 = smul.u32 2, %s26
        $region40: #{tpu_custom_call.1} parent=35 // pred_fallthru
          _
        // Predicated region
        $region41: #{tpu_custom_call.1} parent=35 // pred_check
          %p266 = pneg %p80
        $region42: #{tpu_custom_call.1} parent=35 // pred_check_branch
          %268 = sbr.rel (%p266) target = $region44
        $region43: #{tpu_custom_call.1} parent=35 // pred_region
          %s269 = smul.u32 2, %s26
          %p270 = scmp.lt.s32.totalorder %s25, 1
          %s271 = scalar_select %p270, %s25, 1
          %p272 = scmp.lt.s32.totalorder %s269, 1
          %s273 = scalar_select %p272, %s269, 1
          %s274 = smul.addr %s271, 2
          %s275 = sadd.s32 %s273, %s274
          %s276 = smul.addr %s275, 4
          %s277 = scalar_lea.vmem %s1, %s276
          %s278 = smul.u32 2, %s26
        $region44: #{tpu_custom_call.1} parent=35 // pred_fallthru
          _
      $region36: #{tpu_custom_call.1} parent=5 // pred_fallthru
        _
      %p279 = scmp.le.s32.totalorder 1, %s18
      %p280 = scmp.lt.s32.totalorder %s18, 3
      %p281 = pnand %p279, %p280
      %p282 = pneg %p281
      // Predicated region
      $region45: #{tpu_custom_call.1} parent=5 // pred_check
        _
      $region46: #{tpu_custom_call.1} parent=5 // pred_check_branch
        %284 = sbr.rel (%p281) target = $region48
      $region47: #{tpu_custom_call.1} parent=5 // pred_region
        %s285 = ssub.s32 %s18, 1
        %s286 = smul.u32 2, %s28
        %p287 = scmp.lt.s32.totalorder %s27, 1
        %s288 = scalar_select %p287, %s27, 1
        %p289 = scmp.lt.s32.totalorder %s286, 1
        %s290 = scalar_select %p289, %s286, 1
        %s291 = smul.addr %s288, 2
        %s292 = sadd.s32 %s290, %s291
        %s293 = smul.addr %s292, 4
        %s294 = scalar_lea.vmem %s0, %s293
        %p295 = pneg %p58
        %p296 = pneg %p55
        %s297 = smul.u32 2, %s28
        %p298 = scmp.lt.s32.totalorder %s27, 1
        %s299 = scalar_select %p298, %s27, 1
        %p300 = scmp.lt.s32.totalorder %s297, 1
        %s301 = scalar_select %p300, %s297, 1
        %s302 = smul.addr %s299, 2
        %s303 = sadd.s32 %s301, %s302
        %s304 = smul.addr %s303, 4
        %s305 = scalar_lea.vmem %s1, %s304
        %p306 = pneg %p86
        %p307 = pneg %p83
        %p308 = pneg %p107
        %p309 = pneg %p104
        %p310 = pneg %p128
        %p311 = pneg %p125
        %p312 = pneg %p149
        %p313 = pneg %p146
        %p314 = pneg %p170
        %p315 = pneg %p167
        %p316 = pneg %p191
        %p317 = pneg %p188
        %p318 = pneg %p219
        %p319 = pneg %p216
        %s320 = sand.u32 %s206, 1
        %s321 = scalar_lea.sflag [#allocation4], %s320
        %s322 = sand.u32 %s206, 1
        %s323 = smul.addr %s322, 8
        %s324 = scalar_lea.vmem [#allocation3], %s323
        %s325 = smul.u32 2, %s28
        %p326 = scmp.lt.s32.totalorder %s27, 1
        %s327 = scalar_select %p326, %s27, 1
        %p328 = scmp.lt.s32.totalorder %s325, 1
        %s329 = scalar_select %p328, %s325, 1
        %s330 = smul.addr %s327, 2
        %s331 = sadd.s32 %s329, %s330
        %s332 = smul.addr %s331, 4
        %s333 = scalar_lea.vmem %s0, %s332
        %s334 = smul.u32 2, %s28
        %s335 = smul.u32 2, %s28
        %p336 = scmp.lt.s32.totalorder %s27, 1
        %s337 = scalar_select %p336, %s27, 1
        %p338 = scmp.lt.s32.totalorder %s335, 1
        %s339 = scalar_select %p338, %s335, 1
        %s340 = smul.addr %s337, 2
        %s341 = sadd.s32 %s339, %s340
        %s342 = smul.addr %s341, 4
        %s343 = scalar_lea.vmem %s1, %s342
        %s344 = smul.u32 2, %s28
        %s345 = smul.u32 2, %s28
        %v347 = vld [vmem:[%s2] sm:$0xff]
        %v348 = vpack.c.bf16 %v347, %v347
        %v349 = vld [vmem:[%s3] sm:$0xff]
        %v350 = vpack.c.bf16 %v349, %v349
        %v351 = vld [vmem:[%s4] sm:$0xff]
        %v352 = vld [vmem:[%s5] sm:$0xff]
        %v353 = vld [vmem:[#allocation2] sm:$0x1]
        %v354 = vld [vmem:[%s343] sm:$0xff]
        %v355 = vld [vmem:[%s333] sm:$0xff]
        %v357 = vcombine.high %v355, %v355
        %v359 = vpack.c.bf16 %v355, %v355
        %v360 = vpack.c.bf16 %v357, %v357
        %v362 = vcombine.high %v354, %v354
        %v364 = vpack.c.bf16 %v354, %v354
        %v365 = vpack.c.bf16 %v362, %v362
        %vm366 = vcmask 31744
        %v368 = vsel %vm366, %v350, 0
        %vm370 = vcmask 1041408
        %v372 = vsel %vm370, %v364, 0
        %v375 = vsel %vm370, %v365, 0
        %377 = vmatprep.subr.bf16.mxu0 0
        %378 = vmatpush1.bf16.msra.mxu0 0
        %379 = vmatprep.subr.bf16.mxu0 0
        %380 = vmatpush1.bf16.msra.mxu0 0
        %381 = vmatprep.subr.bf16.mxu0 0
        %382 = vmatpush1.bf16.msra.mxu0 0
        %383 = vmatprep.subr.bf16.mxu0 0
        %384 = vmatpush1.bf16.msra.mxu0 0
        %385 = vmatprep.subr.bf16.mxu0 0
        %386 = vmatpush1.bf16.msra.mxu0 0
        %387 = vmatprep.subr.bf16.mxu0 0
        %388 = vmatpush1.bf16.msra.mxu0 0
        %389 = vmatprep.subr.bf16.mxu0 0
        %390 = vmatpush1.bf16.msra.mxu0 0
        %391 = vmatprep.subr.bf16.mxu0 %v375
        %392 = vmatpush1.bf16.msra.mxu0 %v372
        %393 = vmatprep.subr.bf16.mxu0 0
        %394 = vmatpush2.bf16.msra.mxu0 0
        %395 = vmatprep.subr.bf16.mxu0 0
        %396 = vmatpush2.bf16.msra.mxu0 0
        %397 = vmatprep.subr.bf16.mxu0 0
        %398 = vmatpush2.bf16.msra.mxu0 0
        %399 = vmatprep.subr.bf16.mxu0 0
        %400 = vmatpush2.bf16.msra.mxu0 0
        %401 = vmatprep.subr.bf16.mxu0 0
        %402 = vmatpush2.bf16.msra.mxu0 0
        %403 = vmatprep.subr.bf16.mxu0 0
        %404 = vmatpush2.bf16.msra.mxu0 0
        %405 = vmatprep.subr.bf16.mxu0 0
        %406 = vmatpush2.bf16.msra.mxu0 0
        %407 = vmatprep.subr.bf16.mxu0 0
        %408 = vmatpush2.bf16.msra.mxu0 0
        %409 = vmatprep.mubr.bf16.mxu0 0
        %410 = vmatmul.mubr.bf16.gmra.mxu0 %v368
        %v411 = vpop.f32.mrf.mxu0
        %v412 = vadd.f32 0.0, %v411
        %v413 = vpop.f32.mrf.mxu0
        %v414 = vadd.f32 0.0, %v413
        %v415 = vpop.f32.mrf.mxu0
        %v416 = vpop.f32.mrf.mxu0
        %417 = vdwg.mxu0
        %v419 = vsel %vm366, %v348, 0
        %v422 = vsel %vm370, %v359, 0
        %v425 = vsel %vm370, %v360, 0
        %427 = vmatprep.subr.bf16.mxu0 0
        %428 = vmatpush1.bf16.msra.mxu0 0
        %429 = vmatprep.subr.bf16.mxu0 0
        %430 = vmatpush1.bf16.msra.mxu0 0
        %431 = vmatprep.subr.bf16.mxu0 0
        %432 = vmatpush1.bf16.msra.mxu0 0
        %433 = vmatprep.subr.bf16.mxu0 0
        %434 = vmatpush1.bf16.msra.mxu0 0
        %435 = vmatprep.subr.bf16.mxu0 0
        %436 = vmatpush1.bf16.msra.mxu0 0
        %437 = vmatprep.subr.bf16.mxu0 0
        %438 = vmatpush1.bf16.msra.mxu0 0
        %439 = vmatprep.subr.bf16.mxu0 0
        %440 = vmatpush1.bf16.msra.mxu0 0
        %441 = vmatprep.subr.bf16.mxu0 %v425
        %442 = vmatpush1.bf16.msra.mxu0 %v422
        %443 = vmatprep.subr.bf16.mxu0 0
        %444 = vmatpush2.bf16.msra.mxu0 0
        %445 = vmatprep.subr.bf16.mxu0 0
        %446 = vmatpush2.bf16.msra.mxu0 0
        %447 = vmatprep.subr.bf16.mxu0 0
        %448 = vmatpush2.bf16.msra.mxu0 0
        %449 = vmatprep.subr.bf16.mxu0 0
        %450 = vmatpush2.bf16.msra.mxu0 0
        %451 = vmatprep.subr.bf16.mxu0 0
        %452 = vmatpush2.bf16.msra.mxu0 0
        %453 = vmatprep.subr.bf16.mxu0 0
        %454 = vmatpush2.bf16.msra.mxu0 0
        %455 = vmatprep.subr.bf16.mxu0 0
        %456 = vmatpush2.bf16.msra.mxu0 0
        %457 = vmatprep.subr.bf16.mxu0 0
        %458 = vmatpush2.bf16.msra.mxu0 0
        %459 = vmatprep.mubr.bf16.mxu0 0
        %460 = vmatmul.mubr.bf16.gmra.mxu0 %v419
        %v461 = vpop.f32.mrf.mxu0
        %v462 = vadd.f32 %v412, %v461
        %v463 = vpop.f32.mrf.mxu0
        %v464 = vadd.f32 %v414, %v463
        %v465 = vpop.f32.mrf.mxu0
        %v466 = vpop.f32.mrf.mxu0
        %467 = vdwg.mxu0
        %469 = vset.pattern.permute.xlu0 0
        %470 = vperm.xlu0 %469, %v351
        %v471 = vpop.permute.xlu0 %470
        %v473 = vadd.f32 %v462, %v471
        %v474 = vadd.f32 %v464, %v471
        %v475 = vmax.f32 %v473, 0.0
        %v476 = vmax.f32 %v474, 0.0
        %478 = vset.pattern.permute.xlu0 0
        %479 = vperm.xlu0 %478, %v352
        %v480 = vpop.permute.xlu0 %479
        %v482 = vmul.f32 %v475, %v480
        %v483 = vmul.f32 %v476, %v480
        %v484 = vrot.slane %v482, 4
        %v485 = vadd.f32 %v482, %v484
        %v486 = vrot.slane %v485, 2
        %v487 = vadd.f32 %v485, %v486
        %v488 = vrot.slane %v487, 1
        %v489 = vadd.f32 %v487, %v488
        %v490 = vrot.slane %v483, 4
        %v491 = vadd.f32 %v483, %v490
        %v492 = vrot.slane %v491, 2
        %v493 = vadd.f32 %v491, %v492
        %v494 = vrot.slane %v493, 1
        %v495 = vadd.f32 %v493, %v494
        %497 = vset.pattern.permute.xlu0 0
        %498 = vperm.xlu0 %497, %v353
        %v499 = vpop.permute.xlu0 %498
        %v501 = vlaneseq
        %v502 = vshrl.u32 %v501, 7
        %v503 = vsub.s32 0, %v502
        %v504 = vrot.slane %v499, %v503
        %v505 = vadd.f32 %v489, %v504
        %v506 = vadd.f32 %v495, %v504
        %v507 = vmul.f32 %v505, 0.5
        %v508 = vmul.f32 %v506, 0.5
        %v509 = vtanh.pop %v507
        %v510 = vtanh.pop %v508
        %v511 = vadd.f32 %v509, 1.0
        %v512 = vadd.f32 %v510, 1.0
        %v513 = vmul.f32 %v511, 0.5
        %v514 = vmul.f32 %v512, 0.5
        %v517 = vcombine.low %v513, %v514
        %v519 = vmul.f32 %v354, %v517
        %520 = vst [vmem:[%s324] sm:$0xff] %v519
        %s521 = sand.u32 %s206, 1
        %s522 = scalar_lea.sflag [#allocation4], %s521
        %s523 = sand.u32 %s206, 1
        %s524 = smul.addr %s523, 8
        %s525 = scalar_lea.vmem [#allocation3], %s524
        // Predicated region
        $region49: #{tpu_custom_call.1} parent=47 // pred_check
          %p526 = pneg %p216
        $region50: #{tpu_custom_call.1} parent=47 // pred_check_branch
          %528 = sbr.rel (%p526) target = $region52
        $region51: #{tpu_custom_call.1} parent=47 // pred_region
          %s529 = smul.u32 2, %s28
          %s531 = ssub.s32 128, 128
          %532 = vsyncadd %s522, %s531
          %s533 = smul.addr %s27, 2
          %s534 = sadd.s32 %s529, %s533
          %s535 = smul.addr %s534, 64
          %s536 = scalar_lea.hbm %s7, %s535
          %s538 = sshll.u32 %s525, 4
          %s539 = int_to_ptr.vmem [resolvable:$true] %s538
          %541 = dma.vmem_to_hbm [thread:$0]  %s539, 128, %s536, %s522
        $region52: #{tpu_custom_call.1} parent=47 // pred_fallthru
          _
      $region48: #{tpu_custom_call.1} parent=5 // pred_fallthru
        _
      %p542 = scmp.le.s32.totalorder 2, %s18
      // Predicated region
      $region53: #{tpu_custom_call.1} parent=5 // pred_check
        %p543 = pneg %p542
      $region54: #{tpu_custom_call.1} parent=5 // pred_check_branch
        %545 = sbr.rel (%p543) target = $region56
      $region55: #{tpu_custom_call.1} parent=5 // pred_region
        %s546 = ssub.s32 %s18, 2
        // Predicated region
        $region57: #{tpu_custom_call.1} parent=55 // pred_check
          %p547 = pneg %p222
        $region58: #{tpu_custom_call.1} parent=55 // pred_check_branch
          %549 = sbr.rel (%p547) target = $region60
        $region59: #{tpu_custom_call.1} parent=55 // pred_region
          %s550 = sand.u32 %s207, 1
          %s551 = scalar_lea.sflag [#allocation4], %s550
          %s552 = sand.u32 %s207, 1
          %s553 = smul.addr %s552, 8
          %s554 = scalar_lea.vmem [#allocation3], %s553
          %555 = dma.done %s551, 128
        $region60: #{tpu_custom_call.1} parent=55 // pred_fallthru
          _
      $region56: #{tpu_custom_call.1} parent=5 // pred_fallthru
        _
    $region6: #{tpu_custom_call.1} parent=1 // loop_footer
      %s22 = sadd.s32 1, %s18
    $region7: #{tpu_custom_call.1} parent=1 // loop_footer_branch
      %17 = sbr.rel target = $region3
    $region8: #{tpu_custom_call.1} parent=1 // loop_exit
      _
    %556 = vsyncpa [#allocation4], 1
    %s557 = scalar_lea.sflag [#allocation4], 1
    %558 = vsyncpa %s557, 1

</llo_original>
